<compile_context>
chip_gen: v5e
topology: v5e:2x2
jax: 0.10.0
libtpu: 0.0.40
codegen_flags: <defaults>
</compile_context>

<pallas_src>
import math
from functools import partial

import jax
import jax.numpy as jnp
from jax.experimental import pallas as pl
from jax.experimental.pallas import tpu as pltpu


def _lstm_stack_kernel(x_ref, *refs, num_cells, hidden, has_h, has_c, dot_dtype):
    """Chained LSTMCell updates, fully resident in VMEM.

    refs = ([h0_ref,] [c0_ref,] wih_all_ref, whh_ref, b_all_ref, hc_out_ref)
    Packed gate order along the 4H axis is (i, f, o, g).
    """
    refs = list(refs)
    h0_ref = refs.pop(0) if has_h else None
    c0_ref = refs.pop(0) if has_c else None
    wih_ref, whh_ref, b_ref, hc_ref = refs

    H = hidden
    B = x_ref.shape[0]

    x = x_ref[...].astype(dot_dtype)                       # (B, F) bf16 for MXU
    h = (h0_ref[...].astype(jnp.float32) if has_h
         else jnp.zeros((B, H), jnp.float32))
    c = (c0_ref[...].astype(jnp.float32) if has_c
         else jnp.zeros((B, H), jnp.float32))

    # One wide input projection for all N cells (outside the serial h-chain).
    gates_x = jnp.dot(x, wih_ref[...],
                      preferred_element_type=jnp.float32) + b_ref[...]  # (B, N*4H)

    # TODO(synk): if num_next_steps grows well beyond 4, convert this static
    # unroll to lax.fori_loop carrying (h, c) to bound live ranges; at N=4 the
    # unroll schedules better.
    for n in range(num_cells):                             # small static unroll
        g4 = gates_x[:, n * 4 * H:(n + 1) * 4 * H] + jnp.dot(
            h.astype(dot_dtype), whh_ref[n],
            preferred_element_type=jnp.float32)            # (B, 4H) = [i, f, o, g]
        # sigmoid(i, f, o) via one contiguous 3H-wide tanh pass on the EUP.
        s3 = 0.5 * jnp.tanh(0.5 * g4[:, :3 * H]) + 0.5     # (B, 3H)
        gt = jnp.tanh(g4[:, 3 * H:])                       # (B, H) tanh(g)
        c = s3[:, H:2 * H] * c + s3[:, :H] * gt            # f*c + i*g
        h = s3[:, 2 * H:3 * H] * jnp.tanh(c)               # o*tanh(c)

    # Two direct sub-slice stores instead of concat + single store.
    hc_ref[:, :H] = h.astype(hc_ref.dtype)
    hc_ref[:, H:] = c.astype(hc_ref.dtype)


def init_params(key, num_next_steps, num_step_classes, in_features):
    """PyTorch-layout init matching nn.LSTMCell: uniform(-1/sqrt(H), 1/sqrt(H))."""
    hidden = num_step_classes * num_next_steps
    k = 1.0 / math.sqrt(hidden)
    k0, k1, k2, k3 = jax.random.split(key, 4)
    w_ih = jax.random.uniform(k0, (num_next_steps, 4 * hidden, in_features),
                              jnp.float32, -k, k)
    w_hh = jax.random.uniform(k1, (num_next_steps, 4 * hidden, hidden),
                              jnp.float32, -k, k)
    b_ih = jax.random.uniform(k2, (num_next_steps, 4 * hidden), jnp.float32, -k, k)
    b_hh = jax.random.uniform(k3, (num_next_steps, 4 * hidden), jnp.float32, -k, k)
    return dict(w_ih=w_ih, w_hh=w_hh, b_ih=b_ih, b_hh=b_hh)


def _reorder_gates(w, hidden):
    """Permute last-axis gate blocks from PyTorch (i, f, g, o) to (i, f, o, g)."""
    shp = w.shape
    w4 = w.reshape(shp[:-1] + (4, hidden))
    w4 = w4[..., jnp.array([0, 1, 3, 2]), :]
    return w4.reshape(shp)


def pack_params(raw, dot_dtype=jnp.bfloat16):
    """One-time packing: transpose + gate-reorder + concat + bias-sum + bf16 cast."""
    N, fourH, F = raw["w_ih"].shape
    H = fourH // 4
    # (N, 4H, F) -> (F, N, 4H), reorder gates, -> (F, N*4H)
    w_ih_all = _reorder_gates(jnp.transpose(raw["w_ih"], (2, 0, 1)), H)
    w_ih_all = w_ih_all.reshape(F, N * fourH)
    # (N, 4H, H) -> (N, H, 4H), reorder gates
    w_hh_t = _reorder_gates(jnp.transpose(raw["w_hh"], (0, 2, 1)), H)
    b_all = _reorder_gates(raw["b_ih"] + raw["b_hh"], H).reshape(1, N * fourH)
    return dict(w_ih_all=w_ih_all.astype(dot_dtype),
                w_hh_t=w_hh_t.astype(dot_dtype),
                b_all=b_all.astype(jnp.float32))


def _round_up(x, m):
    return -(-x // m) * m


def lstm_next_step_forward(features, packed, num_next_steps, num_step_classes,
                           previous_tensor=None, hidden_long_term=None,
                           batch_tile=128):
    """Equivalent of LSTMNextStepClassifier.forward.

    Returns (hx reshaped to (B, num_step_classes, num_next_steps), new cx).
    `previous_tensor` plays the role of previous.tensor (hidden_short_term),
    `hidden_long_term` the role of task.hidden_long_term[self] (cx).
    """
    batch = features.shape[0]
    feats = features.reshape(batch, -1)
    # Keep bf16 producers as-is (halves the dominant HBM stream); otherwise f32.
    if feats.dtype != jnp.bfloat16:
        feats = feats.astype(jnp.float32)
    in_features, n4h = packed["w_ih_all"].shape
    hidden = num_step_classes * num_next_steps
    # TODO(synk): reference pads via F.pad on feature-size mismatch and
    # interpolates hx on shape mismatch; here shapes are constructed to match.
    assert feats.shape[1] == in_features

    has_h = previous_tensor is not None
    has_c = hidden_long_term is not None

    # Batch tile: <=128 keeps the per-cell working set inside the 64-vreg file;
    # for moderate batches split into >=2 grid steps so v7x's 2 TCs both work.
    if batch > batch_tile:
        tb = batch_tile
    elif batch >= 16:
        tb = min(batch_tile, _round_up(pl.cdiv(batch, 2), 8))
    else:
        tb = batch
    grid = (pl.cdiv(batch, tb),)

    inputs = [feats]
    in_specs = [pl.BlockSpec((tb, in_features), lambda b: (b, 0))]
    if has_h:
        hx = previous_tensor.reshape(batch, -1).astype(jnp.float32)
        inputs.append(hx)
        in_specs.append(pl.BlockSpec((tb, hidden), lambda b: (b, 0)))
    if has_c:
        cx = hidden_long_term.reshape(batch, hidden).astype(jnp.float32)
        inputs.append(cx)
        in_specs.append(pl.BlockSpec((tb, hidden), lambda b: (b, 0)))
    inputs += [packed["w_ih_all"], packed["w_hh_t"], packed["b_all"]]
    in_specs += [
        pl.BlockSpec((in_features, n4h), lambda b: (0, 0)),
        pl.BlockSpec(packed["w_hh_t"].shape, lambda b: (0, 0, 0)),
        pl.BlockSpec((1, n4h), lambda b: (0, 0)),
    ]

    # Explicit VMEM budget (v7x: 64 MiB total, 32 MiB scoped default).
    fbytes = feats.dtype.itemsize
    wbytes = packed["w_ih_all"].dtype.itemsize
    n_state = int(has_h) + int(has_c)
    vmem_bytes = (
        2 * tb * in_features * fbytes                    # x tiles (double-buffered)
        + 2 * n_state * tb * hidden * 4                  # optional state tiles
        + 2 * in_features * n4h * wbytes                 # W_ih slab (pipeliner x2)
        + 2 * num_next_steps * hidden * 4 * hidden * wbytes  # W_hh
        + 2 * n4h * 4                                    # bias
        + 2 * tb * 2 * hidden * 4                        # output tiles
        + tb * n4h * 4                                   # gates_x temp
        + (4 << 20)                                      # scratch / spill headroom
    )
    vmem_limit = int(min(max(vmem_bytes, 16 << 20), 64 << 20))
    # NOTE: if F*N*4H ever grows toward the v7x budget, stream W_ih per cell
    # via an extra grid axis instead of holding the whole slab resident.

    kernel = partial(_lstm_stack_kernel, num_cells=num_next_steps, hidden=hidden,
                     has_h=has_h, has_c=has_c,
                     dot_dtype=packed["w_ih_all"].dtype)

    hc = pl.pallas_call(
        kernel,
        out_shape=jax.ShapeDtypeStruct((batch, 2 * hidden), jnp.float32),
        grid=grid,
        in_specs=in_specs,
        out_specs=pl.BlockSpec((tb, 2 * hidden), lambda b: (b, 0)),
        compiler_params=pltpu.CompilerParams(
            dimension_semantics=("parallel",),
            vmem_limit_bytes=vmem_limit),
    )(*inputs)

    h_out = hc[:, :hidden]
    c_out = hc[:, hidden:]
    return h_out.reshape(batch, num_step_classes, num_next_steps), c_out


def _reference(features, raw, num_next_steps, num_step_classes,
               previous_tensor=None, hidden_long_term=None,
               dot_dtype=jnp.bfloat16):
    """Pure-JAX reference with the same bf16 dot-input quantization."""
    batch = features.shape[0]
    x = features.reshape(batch, -1).astype(dot_dtype)
    hidden = num_step_classes * num_next_steps
    h = (previous_tensor.reshape(batch, -1).astype(jnp.float32)
         if previous_tensor is not None
         else jnp.zeros((batch, hidden), jnp.float32))
    c = (hidden_long_term.astype(jnp.float32) if hidden_long_term is not None
         else jnp.zeros((batch, hidden), jnp.float32))
    for n in range(num_next_steps):
        gates = (jnp.dot(x, raw["w_ih"][n].T.astype(dot_dtype),
                         preferred_element_type=jnp.float32)
                 + jnp.dot(h.astype(dot_dtype), raw["w_hh"][n].T.astype(dot_dtype),
                           preferred_element_type=jnp.float32)
                 + raw["b_ih"][n] + raw["b_hh"][n])
        i, f, g, o = jnp.split(gates, 4, axis=1)
        c = jax.nn.sigmoid(f) * c + jax.nn.sigmoid(i) * jnp.tanh(g)
        h = jax.nn.sigmoid(o) * jnp.tanh(c)
    return h.reshape(batch, num_step_classes, num_next_steps), c


if __name__ == "__main__":
    # Small shapes consistent with the module:
    batch = 2
    encoder_output_shape = (4, 8, 8)          # in_features = 256
    num_next_steps = 4
    num_step_classes = 8                      # hidden = 32, 4*hidden = 128

    in_features = math.prod(encoder_output_shape)
    key = jax.random.PRNGKey(0)
    k_feat, k_param, k_hx, k_cx = jax.random.split(key, 4)

    features = jax.random.normal(k_feat, (batch,) + encoder_output_shape,
                                 dtype=jnp.float32)
    raw_params = init_params(k_param, num_next_steps, num_step_classes, in_features)
    packed = pack_params(raw_params)

    # Path 1: previous=None, no stored cx (both states initialized in-kernel).
    hx, cx = lstm_next_step_forward(features, packed,
                                    num_next_steps, num_step_classes)
    hx = jax.block_until_ready(hx)
    cx = jax.block_until_ready(cx)
    hx_ref, cx_ref = _reference(features, raw_params,
                                num_next_steps, num_step_classes)
    assert hx.shape == (batch, num_step_classes, num_next_steps)
    assert cx.shape == (batch, num_step_classes * num_next_steps)
    assert jnp.allclose(hx, hx_ref, atol=2e-3, rtol=2e-3)
    assert jnp.allclose(cx, cx_ref, atol=2e-3, rtol=2e-3)

    # Path 2: threaded state (previous.tensor + task.hidden_long_term).
    prev = jax.random.normal(k_hx, (batch, num_step_classes, num_next_steps),
                             dtype=jnp.float32)
    c_prev = jax.random.normal(k_cx, (batch, num_step_classes * num_next_steps),
                               dtype=jnp.float32)
    hx2, cx2 = lstm_next_step_forward(features, packed,
                                      num_next_steps, num_step_classes,
                                      previous_tensor=prev,
                                      hidden_long_term=c_prev)
    hx2 = jax.block_until_ready(hx2)
    cx2 = jax.block_until_ready(cx2)
    hx2_ref, cx2_ref = _reference(features, raw_params,
                                  num_next_steps, num_step_classes,
                                  previous_tensor=prev, hidden_long_term=c_prev)
    assert jnp.allclose(hx2, hx2_ref, atol=2e-3, rtol=2e-3)
    assert jnp.allclose(cx2, cx2_ref, atol=2e-3, rtol=2e-3)

    # Path 3: only the long-term state exists (common case: previous is None,
    # task.hidden_long_term[self] stored) -> only cx is DMA'd, h zero-init in-kernel.
    hx3, cx3 = lstm_next_step_forward(features, packed,
                                      num_next_steps, num_step_classes,
                                      previous_tensor=None,
                                      hidden_long_term=c_prev)
    hx3 = jax.block_until_ready(hx3)
    cx3 = jax.block_until_ready(cx3)
    hx3_ref, cx3_ref = _reference(features, raw_params,
                                  num_next_steps, num_step_classes,
                                  previous_tensor=None, hidden_long_term=c_prev)
    assert jnp.allclose(hx3, hx3_ref, atol=2e-3, rtol=2e-3)
    assert jnp.allclose(cx3, cx3_ref, atol=2e-3, rtol=2e-3)

    print("KERNEL_OK")
</pallas_src>

<mosaic_0001>
module attributes {stable_mosaic.version = 11 : i64} {
  func.func @_lstm_stack_kernel(%arg0: i32, %arg1: memref<2x256xf32, #tpu.memory_space<vmem>>, %arg2: memref<256x512xbf16, #tpu.memory_space<vmem>>, %arg3: memref<4x32x128xbf16, #tpu.memory_space<vmem>>, %arg4: memref<1x512xf32, #tpu.memory_space<vmem>>, %arg5: memref<2x64xf32, #tpu.memory_space<vmem>>) attributes {dimension_semantics = [#tpu.dimension_semantics<parallel>], iteration_bounds = array<i64: 1>, scalar_prefetch = 0 : i64, scratch_operands = 0 : i64, tpu.core_type = #tpu.core_type<tc>, window_params = [{transform_indices = @transform_0, window_bounds = array<i64: 2, 256>}, {pipeline_mode = #tpu.pipeline_mode<synchronous>, transform_indices = @transform_1, window_bounds = array<i64: 256, 512>}, {pipeline_mode = #tpu.pipeline_mode<synchronous>, transform_indices = @transform_2, window_bounds = array<i64: 4, 32, 128>}, {pipeline_mode = #tpu.pipeline_mode<synchronous>, transform_indices = @transform_3, window_bounds = array<i64: 1, 512>}, {transform_indices = @transform_4, window_bounds = array<i64: 2, 64>}]} {
    %c0 = arith.constant 0 : index
    %c0_0 = arith.constant 0 : index
    %0 = vector.load %arg1[%c0, %c0_0] : memref<2x256xf32, #tpu.memory_space<vmem>>, vector<2x256xf32>
    %1 = arith.truncf %0 : vector<2x256xf32> to vector<2x256xbf16>
    %cst = arith.constant 0.000000e+00 : f32
    %2 = vector.broadcast %cst : f32 to vector<2x32xf32>
    %cst_1 = arith.constant 0.000000e+00 : f32
    %3 = vector.broadcast %cst_1 : f32 to vector<2x32xf32>
    %c0_2 = arith.constant 0 : index
    %c0_3 = arith.constant 0 : index
    %4 = vector.load %arg2[%c0_2, %c0_3] : memref<256x512xbf16, #tpu.memory_space<vmem>>, vector<256x512xbf16>
    %cst_4 = arith.constant dense<0.000000e+00> : vector<2x512xf32>
    %5 = tpu.matmul %1, %4, %cst_4 {dimension_numbers = #tpu.dot_dimension_numbers<[1], [0], [0], [1], [0, 0, 1, 1], [], []>} : vector<2x256xbf16>, vector<256x512xbf16>, vector<2x512xf32> -> vector<2x512xf32>
    %c0_5 = arith.constant 0 : index
    %c0_6 = arith.constant 0 : index
    %6 = vector.load %arg4[%c0_5, %c0_6] : memref<1x512xf32, #tpu.memory_space<vmem>>, vector<1x512xf32>
    %7 = vector.broadcast %6 : vector<1x512xf32> to vector<2x512xf32>
    %8 = arith.addf %5, %7 : vector<2x512xf32>
    %9 = vector.extract_strided_slice %8 {offsets = [0, 0], sizes = [2, 128], strides = [1, 1]} : vector<2x512xf32> to vector<2x128xf32>
    %10 = arith.truncf %2 : vector<2x32xf32> to vector<2x32xbf16>
    %c0_7 = arith.constant 0 : index
    %c0_8 = arith.constant 0 : index
    %c0_9 = arith.constant 0 : index
    %11 = vector.load %arg3[%c0_7, %c0_8, %c0_9] : memref<4x32x128xbf16, #tpu.memory_space<vmem>>, vector<1x32x128xbf16>
    %12 = vector.shape_cast %11 : vector<1x32x128xbf16> to vector<32x128xbf16>
    %cst_10 = arith.constant dense<0.000000e+00> : vector<2x128xf32>
    %13 = tpu.matmul %10, %12, %cst_10 {dimension_numbers = #tpu.dot_dimension_numbers<[1], [0], [0], [1], [0, 0, 1, 1], [], []>} : vector<2x32xbf16>, vector<32x128xbf16>, vector<2x128xf32> -> vector<2x128xf32>
    %14 = arith.addf %9, %13 : vector<2x128xf32>
    %15 = vector.extract_strided_slice %14 {offsets = [0, 0], sizes = [2, 96], strides = [1, 1]} : vector<2x128xf32> to vector<2x96xf32>
    %cst_11 = arith.constant 5.000000e-01 : f32
    %16 = vector.broadcast %cst_11 : f32 to vector<2x96xf32>
    %17 = arith.mulf %16, %15 : vector<2x96xf32>
    %18 = math.tanh %17 : vector<2x96xf32>
    %cst_12 = arith.constant 5.000000e-01 : f32
    %19 = vector.broadcast %cst_12 : f32 to vector<2x96xf32>
    %20 = arith.mulf %19, %18 : vector<2x96xf32>
    %cst_13 = arith.constant 5.000000e-01 : f32
    %21 = vector.broadcast %cst_13 : f32 to vector<2x96xf32>
    %22 = arith.addf %20, %21 : vector<2x96xf32>
    %23 = vector.extract_strided_slice %14 {offsets = [0, 96], sizes = [2, 32], strides = [1, 1]} : vector<2x128xf32> to vector<2x32xf32>
    %24 = math.tanh %23 : vector<2x32xf32>
    %25 = vector.extract_strided_slice %22 {offsets = [0, 32], sizes = [2, 32], strides = [1, 1]} : vector<2x96xf32> to vector<2x32xf32>
    %26 = arith.mulf %25, %3 : vector<2x32xf32>
    %27 = vector.extract_strided_slice %22 {offsets = [0, 0], sizes = [2, 32], strides = [1, 1]} : vector<2x96xf32> to vector<2x32xf32>
    %28 = arith.mulf %27, %24 : vector<2x32xf32>
    %29 = arith.addf %26, %28 : vector<2x32xf32>
    %30 = vector.extract_strided_slice %22 {offsets = [0, 64], sizes = [2, 32], strides = [1, 1]} : vector<2x96xf32> to vector<2x32xf32>
    %31 = math.tanh %29 : vector<2x32xf32>
    %32 = arith.mulf %30, %31 : vector<2x32xf32>
    %33 = vector.extract_strided_slice %8 {offsets = [0, 128], sizes = [2, 128], strides = [1, 1]} : vector<2x512xf32> to vector<2x128xf32>
    %34 = arith.truncf %32 : vector<2x32xf32> to vector<2x32xbf16>
    %c1 = arith.constant 1 : index
    %c0_14 = arith.constant 0 : index
    %c0_15 = arith.constant 0 : index
    %35 = vector.load %arg3[%c1, %c0_14, %c0_15] : memref<4x32x128xbf16, #tpu.memory_space<vmem>>, vector<1x32x128xbf16>
    %36 = vector.shape_cast %35 : vector<1x32x128xbf16> to vector<32x128xbf16>
    %cst_16 = arith.constant dense<0.000000e+00> : vector<2x128xf32>
    %37 = tpu.matmul %34, %36, %cst_16 {dimension_numbers = #tpu.dot_dimension_numbers<[1], [0], [0], [1], [0, 0, 1, 1], [], []>} : vector<2x32xbf16>, vector<32x128xbf16>, vector<2x128xf32> -> vector<2x128xf32>
    %38 = arith.addf %33, %37 : vector<2x128xf32>
    %39 = vector.extract_strided_slice %38 {offsets = [0, 0], sizes = [2, 96], strides = [1, 1]} : vector<2x128xf32> to vector<2x96xf32>
    %cst_17 = arith.constant 5.000000e-01 : f32
    %40 = vector.broadcast %cst_17 : f32 to vector<2x96xf32>
    %41 = arith.mulf %40, %39 : vector<2x96xf32>
    %42 = math.tanh %41 : vector<2x96xf32>
    %cst_18 = arith.constant 5.000000e-01 : f32
    %43 = vector.broadcast %cst_18 : f32 to vector<2x96xf32>
    %44 = arith.mulf %43, %42 : vector<2x96xf32>
    %cst_19 = arith.constant 5.000000e-01 : f32
    %45 = vector.broadcast %cst_19 : f32 to vector<2x96xf32>
    %46 = arith.addf %44, %45 : vector<2x96xf32>
    %47 = vector.extract_strided_slice %38 {offsets = [0, 96], sizes = [2, 32], strides = [1, 1]} : vector<2x128xf32> to vector<2x32xf32>
    %48 = math.tanh %47 : vector<2x32xf32>
    %49 = vector.extract_strided_slice %46 {offsets = [0, 32], sizes = [2, 32], strides = [1, 1]} : vector<2x96xf32> to vector<2x32xf32>
    %50 = arith.mulf %49, %29 : vector<2x32xf32>
    %51 = vector.extract_strided_slice %46 {offsets = [0, 0], sizes = [2, 32], strides = [1, 1]} : vector<2x96xf32> to vector<2x32xf32>
    %52 = arith.mulf %51, %48 : vector<2x32xf32>
    %53 = arith.addf %50, %52 : vector<2x32xf32>
    %54 = vector.extract_strided_slice %46 {offsets = [0, 64], sizes = [2, 32], strides = [1, 1]} : vector<2x96xf32> to vector<2x32xf32>
    %55 = math.tanh %53 : vector<2x32xf32>
    %56 = arith.mulf %54, %55 : vector<2x32xf32>
    %57 = vector.extract_strided_slice %8 {offsets = [0, 256], sizes = [2, 128], strides = [1, 1]} : vector<2x512xf32> to vector<2x128xf32>
    %58 = arith.truncf %56 : vector<2x32xf32> to vector<2x32xbf16>
    %c2 = arith.constant 2 : index
    %c0_20 = arith.constant 0 : index
    %c0_21 = arith.constant 0 : index
    %59 = vector.load %arg3[%c2, %c0_20, %c0_21] : memref<4x32x128xbf16, #tpu.memory_space<vmem>>, vector<1x32x128xbf16>
    %60 = vector.shape_cast %59 : vector<1x32x128xbf16> to vector<32x128xbf16>
    %cst_22 = arith.constant dense<0.000000e+00> : vector<2x128xf32>
    %61 = tpu.matmul %58, %60, %cst_22 {dimension_numbers = #tpu.dot_dimension_numbers<[1], [0], [0], [1], [0, 0, 1, 1], [], []>} : vector<2x32xbf16>, vector<32x128xbf16>, vector<2x128xf32> -> vector<2x128xf32>
    %62 = arith.addf %57, %61 : vector<2x128xf32>
    %63 = vector.extract_strided_slice %62 {offsets = [0, 0], sizes = [2, 96], strides = [1, 1]} : vector<2x128xf32> to vector<2x96xf32>
    %cst_23 = arith.constant 5.000000e-01 : f32
    %64 = vector.broadcast %cst_23 : f32 to vector<2x96xf32>
    %65 = arith.mulf %64, %63 : vector<2x96xf32>
    %66 = math.tanh %65 : vector<2x96xf32>
    %cst_24 = arith.constant 5.000000e-01 : f32
    %67 = vector.broadcast %cst_24 : f32 to vector<2x96xf32>
    %68 = arith.mulf %67, %66 : vector<2x96xf32>
    %cst_25 = arith.constant 5.000000e-01 : f32
    %69 = vector.broadcast %cst_25 : f32 to vector<2x96xf32>
    %70 = arith.addf %68, %69 : vector<2x96xf32>
    %71 = vector.extract_strided_slice %62 {offsets = [0, 96], sizes = [2, 32], strides = [1, 1]} : vector<2x128xf32> to vector<2x32xf32>
    %72 = math.tanh %71 : vector<2x32xf32>
    %73 = vector.extract_strided_slice %70 {offsets = [0, 32], sizes = [2, 32], strides = [1, 1]} : vector<2x96xf32> to vector<2x32xf32>
    %74 = arith.mulf %73, %53 : vector<2x32xf32>
    %75 = vector.extract_strided_slice %70 {offsets = [0, 0], sizes = [2, 32], strides = [1, 1]} : vector<2x96xf32> to vector<2x32xf32>
    %76 = arith.mulf %75, %72 : vector<2x32xf32>
    %77 = arith.addf %74, %76 : vector<2x32xf32>
    %78 = vector.extract_strided_slice %70 {offsets = [0, 64], sizes = [2, 32], strides = [1, 1]} : vector<2x96xf32> to vector<2x32xf32>
    %79 = math.tanh %77 : vector<2x32xf32>
    %80 = arith.mulf %78, %79 : vector<2x32xf32>
    %81 = vector.extract_strided_slice %8 {offsets = [0, 384], sizes = [2, 128], strides = [1, 1]} : vector<2x512xf32> to vector<2x128xf32>
    %82 = arith.truncf %80 : vector<2x32xf32> to vector<2x32xbf16>
    %c3 = arith.constant 3 : index
    %c0_26 = arith.constant 0 : index
    %c0_27 = arith.constant 0 : index
    %83 = vector.load %arg3[%c3, %c0_26, %c0_27] : memref<4x32x128xbf16, #tpu.memory_space<vmem>>, vector<1x32x128xbf16>
    %84 = vector.shape_cast %83 : vector<1x32x128xbf16> to vector<32x128xbf16>
    %cst_28 = arith.constant dense<0.000000e+00> : vector<2x128xf32>
    %85 = tpu.matmul %82, %84, %cst_28 {dimension_numbers = #tpu.dot_dimension_numbers<[1], [0], [0], [1], [0, 0, 1, 1], [], []>} : vector<2x32xbf16>, vector<32x128xbf16>, vector<2x128xf32> -> vector<2x128xf32>
    %86 = arith.addf %81, %85 : vector<2x128xf32>
    %87 = vector.extract_strided_slice %86 {offsets = [0, 0], sizes = [2, 96], strides = [1, 1]} : vector<2x128xf32> to vector<2x96xf32>
    %cst_29 = arith.constant 5.000000e-01 : f32
    %88 = vector.broadcast %cst_29 : f32 to vector<2x96xf32>
    %89 = arith.mulf %88, %87 : vector<2x96xf32>
    %90 = math.tanh %89 : vector<2x96xf32>
    %cst_30 = arith.constant 5.000000e-01 : f32
    %91 = vector.broadcast %cst_30 : f32 to vector<2x96xf32>
    %92 = arith.mulf %91, %90 : vector<2x96xf32>
    %cst_31 = arith.constant 5.000000e-01 : f32
    %93 = vector.broadcast %cst_31 : f32 to vector<2x96xf32>
    %94 = arith.addf %92, %93 : vector<2x96xf32>
    %95 = vector.extract_strided_slice %86 {offsets = [0, 96], sizes = [2, 32], strides = [1, 1]} : vector<2x128xf32> to vector<2x32xf32>
    %96 = math.tanh %95 : vector<2x32xf32>
    %97 = vector.extract_strided_slice %94 {offsets = [0, 32], sizes = [2, 32], strides = [1, 1]} : vector<2x96xf32> to vector<2x32xf32>
    %98 = arith.mulf %97, %77 : vector<2x32xf32>
    %99 = vector.extract_strided_slice %94 {offsets = [0, 0], sizes = [2, 32], strides = [1, 1]} : vector<2x96xf32> to vector<2x32xf32>
    %100 = arith.mulf %99, %96 : vector<2x32xf32>
    %101 = arith.addf %98, %100 : vector<2x32xf32>
    %102 = vector.extract_strided_slice %94 {offsets = [0, 64], sizes = [2, 32], strides = [1, 1]} : vector<2x96xf32> to vector<2x32xf32>
    %103 = math.tanh %101 : vector<2x32xf32>
    %104 = arith.mulf %102, %103 : vector<2x32xf32>
    %c0_32 = arith.constant 0 : index
    %c0_33 = arith.constant 0 : index
    %105 = vector.load %arg5[%c0_32, %c0_33] : memref<2x64xf32, #tpu.memory_space<vmem>>, vector<2x32xf32>
    tpu.vector_store %arg5[%c0_32, %c0_33], %104 {strides = array<i32>} : memref<2x64xf32, #tpu.memory_space<vmem>>, vector<2x32xf32>,
    %c0_34 = arith.constant 0 : index
    %c32 = arith.constant 32 : index
    %106 = vector.load %arg5[%c0_34, %c32] : memref<2x64xf32, #tpu.memory_space<vmem>>, vector<2x32xf32>
    tpu.vector_store %arg5[%c0_34, %c32], %101 {strides = array<i32>} : memref<2x64xf32, #tpu.memory_space<vmem>>, vector<2x32xf32>,
    return
  }
  func.func @transform_0(%arg0: i32) -> (i32, i32) {
    %c0_i32 = arith.constant 0 : i32
    %c0_i32_0 = arith.constant 0 : i32
    return %arg0, %c0_i32 : i32, i32
  }
  func.func @transform_1(%arg0: i32) -> (i32, i32) {
    %c0_i32 = arith.constant 0 : i32
    %c0_i32_0 = arith.constant 0 : i32
    %c0_i32_1 = arith.constant 0 : i32
    return %c0_i32, %c0_i32_0 : i32, i32
  }
  func.func @transform_2(%arg0: i32) -> (i32, i32, i32) {
    %c0_i32 = arith.constant 0 : i32
    %c0_i32_0 = arith.constant 0 : i32
    %c0_i32_1 = arith.constant 0 : i32
    %c0_i32_2 = arith.constant 0 : i32
    return %c0_i32, %c0_i32_0, %c0_i32_1 : i32, i32, i32
  }
  func.func @transform_3(%arg0: i32) -> (i32, i32) {
    %c0_i32 = arith.constant 0 : i32
    %c0_i32_0 = arith.constant 0 : i32
    %c0_i32_1 = arith.constant 0 : i32
    return %c0_i32, %c0_i32_0 : i32, i32
  }
  func.func @transform_4(%arg0: i32) -> (i32, i32) {
    %c0_i32 = arith.constant 0 : i32
    %c0_i32_0 = arith.constant 0 : i32
    return %arg0, %c0_i32 : i32, i32
  }
}

</mosaic_0001>

<llo_original>
// kernel: tpu_custom_call.1
$region0: #{tpu_custom_call.1}
  #allocation0 [shape = 'u32[]', space=smem, size = 0x4, offset = 0x4, fixed_abs, tag = 'smem constant byte address 0x4 - core index']
  #allocation1 [shape = 'u32[72,128]{1,0:T(1,128)}', space=vmem, size = 0x9000, scoped, tag = 'internal scratch']
  %s0 = inlined_call_operand.hbm [shape: f32[2,256], index: 0, kind: input, shape index: {}]
  %s1 = inlined_call_operand.hbm [shape: bf16[256,512], index: 1, kind: input, shape index: {}]
  %s2 = inlined_call_operand.hbm [shape: bf16[4,32,128], index: 2, kind: input, shape index: {}]
  %s3 = inlined_call_operand.hbm [shape: f32[1,512], index: 3, kind: input, shape index: {}]
  %s4 = inlined_call_operand.hbm [shape: f32[2,64], index: 4, kind: output, shape index: {}]
  %s5 = sld [smem:[#allocation0]]
  $region42: #{tpu_custom_call.1} parent=0
    _
  %s7 = ssub.s32 1, %s5
  %s8 = scalar_select 0, %s7, %s5
  $region1: #{tpu_custom_call.1} parent=0
    #allocation2 [shape = 'u8[2048]{0}', space=vmem, size = 0x800, scoped, tag = 'input window, operand 0, single buffered']
    #allocation3 [shape = 's32[1]{0}', space=sflag, size = 0x4, scoped, tag = 'scoped memory for tpu_custom_call.1']
    #allocation4 [shape = 's32[1]{0}', space=sflag, size = 0x4, scoped, tag = 'scoped memory for tpu_custom_call.1']
    #allocation5 [shape = 'u8[262144]{0}', space=vmem, size = 0x40000, scoped, tag = 'input window, operand 1, single buffered']
    #allocation6 [shape = 's32[1]{0}', space=sflag, size = 0x4, scoped, tag = 'scoped memory for tpu_custom_call.1']
    #allocation7 [shape = 'u8[32768]{0}', space=vmem, size = 0x8000, scoped, tag = 'input window, operand 2, single buffered']
    #allocation8 [shape = 'u8[2048]{0}', space=vmem, size = 0x800, scoped, tag = 'input window, operand 3, single buffered']
    #allocation9 [shape = 's32[1]{0}', space=sflag, size = 0x4, scoped, tag = 'scoped memory for tpu_custom_call.1']
    #allocation10 [shape = 'u8[1024]{0}', space=vmem, size = 0x400, scoped, tag = 'output window, operand 0, single buffered']
    %9 = vsyncpa [#allocation3], 0
    %10 = vsyncpa [#allocation6], 0
    %11 = vsyncpa [#allocation9], 0
    %12 = vsyncpa [#allocation4], 0
    // Predicated region
    $region2: #{tpu_custom_call.1} parent=1 // pred_check
      _
    $region3: #{tpu_custom_call.1} parent=1 // pred_check_branch
      %14 = sbr.rel (0) target = $region5
    $region4: #{tpu_custom_call.1} parent=1 // pred_region
      %16 = vsyncadd [#allocation3], 0
      %s18 = sshll.u32 %s0, 4
      %s19 = int_to_ptr.hbm [resolvable:$true] %s18
      %s20 = sshll.u32 [#allocation2], 4
      %s21 = int_to_ptr.vmem [resolvable:$true] %s20
      %23 = dma.hbm_to_vmem [thread:$0]  %s19, 64, %s21, [#allocation3]
    $region5: #{tpu_custom_call.1} parent=1 // pred_fallthru
      _
    // Predicated region
    $region6: #{tpu_custom_call.1} parent=1 // pred_check
      _
    $region7: #{tpu_custom_call.1} parent=1 // pred_check_branch
      %25 = sbr.rel (0) target = $region9
    $region8: #{tpu_custom_call.1} parent=1 // pred_region
      %27 = vsyncadd [#allocation6], 0
      %s28 = sshll.u32 %s1, 4
      %s29 = int_to_ptr.hbm [resolvable:$true] %s28
      %s30 = sshll.u32 [#allocation5], 4
      %s31 = int_to_ptr.vmem [resolvable:$true] %s30
      %36 = dma.hbm_to_vmem [thread:$0]  %s29, 8192, %s31, [#allocation6], 256, 256, 16
    $region9: #{tpu_custom_call.1} parent=1 // pred_fallthru
      _
    // Predicated region
    $region10: #{tpu_custom_call.1} parent=1 // pred_check
      _
    $region11: #{tpu_custom_call.1} parent=1 // pred_check_branch
      %38 = sbr.rel (0) target = $region13
    $region12: #{tpu_custom_call.1} parent=1 // pred_region
      %40 = vsyncadd [#allocation6], 0
      %s41 = sshll.u32 %s2, 4
      %s42 = int_to_ptr.hbm [resolvable:$true] %s41
      %s43 = sshll.u32 [#allocation7], 4
      %s44 = int_to_ptr.vmem [resolvable:$true] %s43
      %49 = dma.hbm_to_vmem [thread:$0]  %s42, 1024, %s44, [#allocation6], 64, 64, 4
    $region13: #{tpu_custom_call.1} parent=1 // pred_fallthru
      _
    // Predicated region
    $region14: #{tpu_custom_call.1} parent=1 // pred_check
      _
    $region15: #{tpu_custom_call.1} parent=1 // pred_check_branch
      %51 = sbr.rel (0) target = $region17
    $region16: #{tpu_custom_call.1} parent=1 // pred_region
      %53 = vsyncadd [#allocation9], 0
      %s55 = sshll.u32 %s3, 4
      %s56 = int_to_ptr.hbm [resolvable:$true] %s55
      %s57 = sshll.u32 [#allocation8], 4
      %s58 = int_to_ptr.vmem [resolvable:$true] %s57
      %60 = dma.hbm_to_vmem [thread:$0]  %s56, 64, %s58, [#allocation9]
    $region17: #{tpu_custom_call.1} parent=1 // pred_fallthru
      _
    // Predicated region
    $region18: #{tpu_custom_call.1} parent=1 // pred_check
      _
    $region19: #{tpu_custom_call.1} parent=1 // pred_check_branch
      %62 = sbr.rel (0) target = $region21
    $region20: #{tpu_custom_call.1} parent=1 // pred_region
      %64 = dma.done [#allocation3], 64
    $region21: #{tpu_custom_call.1} parent=1 // pred_fallthru
      _
    // Predicated region
    $region22: #{tpu_custom_call.1} parent=1 // pred_check
      _
    $region23: #{tpu_custom_call.1} parent=1 // pred_check_branch
      %66 = sbr.rel (0) target = $region25
    $region24: #{tpu_custom_call.1} parent=1 // pred_region
      %68 = dma.done [#allocation6], 8192
    $region25: #{tpu_custom_call.1} parent=1 // pred_fallthru
      _
    // Predicated region
    $region26: #{tpu_custom_call.1} parent=1 // pred_check
      _
    $region27: #{tpu_custom_call.1} parent=1 // pred_check_branch
      %70 = sbr.rel (0) target = $region29
    $region28: #{tpu_custom_call.1} parent=1 // pred_region
      %72 = dma.done [#allocation6], 1024
    $region29: #{tpu_custom_call.1} parent=1 // pred_fallthru
      _
    // Predicated region
    $region30: #{tpu_custom_call.1} parent=1 // pred_check
      _
    $region31: #{tpu_custom_call.1} parent=1 // pred_check_branch
      %74 = sbr.rel (0) target = $region33
    $region32: #{tpu_custom_call.1} parent=1 // pred_region
      %76 = dma.done [#allocation9], 64
    $region33: #{tpu_custom_call.1} parent=1 // pred_fallthru
      _
    %v78 = vld [vmem:[#allocation2] sm:$0xf]
    %80 = vst [vmem:[#allocation1] ss:$4 sm:$0xff] %v78
    %v81 = vld.sshfl [vmem:[#allocation1] sm:$0xff pattern:$0x73625140]
    %v82 = vld.sshfl [vmem:[#allocation1 + $0x8] sm:$0xff pattern:$0x73625140]
    %v85 = vpack.c.bf16 %v81, %v81
    %v86 = vpack.c.bf16 %v82, %v82
    %v87 = vld [vmem:[#allocation5] sm:$0xff]
    %v88 = vld [vmem:[#allocation5 + $0x8] sm:$0xff]
    %v89 = vld [vmem:[#allocation5 + $0x10] sm:$0xff]
    %v90 = vld [vmem:[#allocation5 + $0x18] sm:$0xff]
    %v91 = vld [vmem:[#allocation5 + $0x20] sm:$0xff]
    %v92 = vld [vmem:[#allocation5 + $0x28] sm:$0xff]
    %v93 = vld [vmem:[#allocation5 + $0x30] sm:$0xff]
    %v94 = vld [vmem:[#allocation5 + $0x38] sm:$0xff]
    %v95 = vld [vmem:[#allocation5 + $0x40] sm:$0xff]
    %v96 = vld [vmem:[#allocation5 + $0x48] sm:$0xff]
    %v97 = vld [vmem:[#allocation5 + $0x50] sm:$0xff]
    %v98 = vld [vmem:[#allocation5 + $0x58] sm:$0xff]
    %v99 = vld [vmem:[#allocation5 + $0x60] sm:$0xff]
    %v100 = vld [vmem:[#allocation5 + $0x68] sm:$0xff]
    %v101 = vld [vmem:[#allocation5 + $0x70] sm:$0xff]
    %v102 = vld [vmem:[#allocation5 + $0x78] sm:$0xff]
    %v103 = vld [vmem:[#allocation5 + $0x80] sm:$0xff]
    %v104 = vld [vmem:[#allocation5 + $0x88] sm:$0xff]
    %v105 = vld [vmem:[#allocation5 + $0x90] sm:$0xff]
    %v106 = vld [vmem:[#allocation5 + $0x98] sm:$0xff]
    %v107 = vld [vmem:[#allocation5 + $0xa0] sm:$0xff]
    %v108 = vld [vmem:[#allocation5 + $0xa8] sm:$0xff]
    %v109 = vld [vmem:[#allocation5 + $0xb0] sm:$0xff]
    %v110 = vld [vmem:[#allocation5 + $0xb8] sm:$0xff]
    %v111 = vld [vmem:[#allocation5 + $0xc0] sm:$0xff]
    %v112 = vld [vmem:[#allocation5 + $0xc8] sm:$0xff]
    %v113 = vld [vmem:[#allocation5 + $0xd0] sm:$0xff]
    %v114 = vld [vmem:[#allocation5 + $0xd8] sm:$0xff]
    %v115 = vld [vmem:[#allocation5 + $0xe0] sm:$0xff]
    %v116 = vld [vmem:[#allocation5 + $0xe8] sm:$0xff]
    %v117 = vld [vmem:[#allocation5 + $0xf0] sm:$0xff]
    %v118 = vld [vmem:[#allocation5 + $0xf8] sm:$0xff]
    %v119 = vld [vmem:[#allocation5 + $0x100] sm:$0xff]
    %v120 = vld [vmem:[#allocation5 + $0x108] sm:$0xff]
    %v121 = vld [vmem:[#allocation5 + $0x110] sm:$0xff]
    %v122 = vld [vmem:[#allocation5 + $0x118] sm:$0xff]
    %v123 = vld [vmem:[#allocation5 + $0x120] sm:$0xff]
    %v124 = vld [vmem:[#allocation5 + $0x128] sm:$0xff]
    %v125 = vld [vmem:[#allocation5 + $0x130] sm:$0xff]
    %v126 = vld [vmem:[#allocation5 + $0x138] sm:$0xff]
    %v127 = vld [vmem:[#allocation5 + $0x140] sm:$0xff]
    %v128 = vld [vmem:[#allocation5 + $0x148] sm:$0xff]
    %v129 = vld [vmem:[#allocation5 + $0x150] sm:$0xff]
    %v130 = vld [vmem:[#allocation5 + $0x158] sm:$0xff]
    %v131 = vld [vmem:[#allocation5 + $0x160] sm:$0xff]
    %v132 = vld [vmem:[#allocation5 + $0x168] sm:$0xff]
    %v133 = vld [vmem:[#allocation5 + $0x170] sm:$0xff]
    %v134 = vld [vmem:[#allocation5 + $0x178] sm:$0xff]
    %v135 = vld [vmem:[#allocation5 + $0x180] sm:$0xff]
    %v136 = vld [vmem:[#allocation5 + $0x188] sm:$0xff]
    %v137 = vld [vmem:[#allocation5 + $0x190] sm:$0xff]
    %v138 = vld [vmem:[#allocation5 + $0x198] sm:$0xff]
    %v139 = vld [vmem:[#allocation5 + $0x1a0] sm:$0xff]
    %v140 = vld [vmem:[#allocation5 + $0x1a8] sm:$0xff]
    %v141 = vld [vmem:[#allocation5 + $0x1b0] sm:$0xff]
    %v142 = vld [vmem:[#allocation5 + $0x1b8] sm:$0xff]
    %v143 = vld [vmem:[#allocation5 + $0x1c0] sm:$0xff]
    %v144 = vld [vmem:[#allocation5 + $0x1c8] sm:$0xff]
    %v145 = vld [vmem:[#allocation5 + $0x1d0] sm:$0xff]
    %v146 = vld [vmem:[#allocation5 + $0x1d8] sm:$0xff]
    %v147 = vld [vmem:[#allocation5 + $0x1e0] sm:$0xff]
    %v148 = vld [vmem:[#allocation5 + $0x1e8] sm:$0xff]
    %v149 = vld [vmem:[#allocation5 + $0x1f0] sm:$0xff]
    %v150 = vld [vmem:[#allocation5 + $0x1f8] sm:$0xff]
    %v151 = vld [vmem:[#allocation8] sm:$0xf]
    %v153 = vperm.slane %v151, 0
    %v154 = vperm.slane %v151, 1
    %v155 = vperm.slane %v151, 2
    %v156 = vperm.slane %v151, 3
    %v225 = vunpack.c.l.b16 %v87
    %v226 = vunpack.c.h.b16 %v87
    %v227 = vunpack.c.l.b16 %v88
    %v228 = vunpack.c.h.b16 %v88
    %v229 = vunpack.c.l.b16 %v89
    %v230 = vunpack.c.h.b16 %v89
    %v231 = vunpack.c.l.b16 %v90
    %v232 = vunpack.c.h.b16 %v90
    %v233 = vunpack.c.l.b16 %v91
    %v234 = vunpack.c.h.b16 %v91
    %v235 = vunpack.c.l.b16 %v92
    %v236 = vunpack.c.h.b16 %v92
    %v237 = vunpack.c.l.b16 %v93
    %v238 = vunpack.c.h.b16 %v93
    %v239 = vunpack.c.l.b16 %v94
    %v240 = vunpack.c.h.b16 %v94
    %v241 = vunpack.c.l.b16 %v95
    %v242 = vunpack.c.h.b16 %v95
    %v243 = vunpack.c.l.b16 %v96
    %v244 = vunpack.c.h.b16 %v96
    %v245 = vunpack.c.l.b16 %v97
    %v246 = vunpack.c.h.b16 %v97
    %v247 = vunpack.c.l.b16 %v98
    %v248 = vunpack.c.h.b16 %v98
    %v249 = vunpack.c.l.b16 %v99
    %v250 = vunpack.c.h.b16 %v99
    %v251 = vunpack.c.l.b16 %v100
    %v252 = vunpack.c.h.b16 %v100
    %v253 = vunpack.c.l.b16 %v101
    %v254 = vunpack.c.h.b16 %v101
    %v255 = vunpack.c.l.b16 %v102
    %v256 = vunpack.c.h.b16 %v102
    %v257 = vunpack.c.l.b16 %v103
    %v258 = vunpack.c.h.b16 %v103
    %v259 = vunpack.c.l.b16 %v104
    %v260 = vunpack.c.h.b16 %v104
    %v261 = vunpack.c.l.b16 %v105
    %v262 = vunpack.c.h.b16 %v105
    %v263 = vunpack.c.l.b16 %v106
    %v264 = vunpack.c.h.b16 %v106
    %v265 = vunpack.c.l.b16 %v107
    %v266 = vunpack.c.h.b16 %v107
    %v267 = vunpack.c.l.b16 %v108
    %v268 = vunpack.c.h.b16 %v108
    %v269 = vunpack.c.l.b16 %v109
    %v270 = vunpack.c.h.b16 %v109
    %v271 = vunpack.c.l.b16 %v110
    %v272 = vunpack.c.h.b16 %v110
    %v273 = vunpack.c.l.b16 %v111
    %v274 = vunpack.c.h.b16 %v111
    %v275 = vunpack.c.l.b16 %v112
    %v276 = vunpack.c.h.b16 %v112
    %v277 = vunpack.c.l.b16 %v113
    %v278 = vunpack.c.h.b16 %v113
    %v279 = vunpack.c.l.b16 %v114
    %v280 = vunpack.c.h.b16 %v114
    %v281 = vunpack.c.l.b16 %v115
    %v282 = vunpack.c.h.b16 %v115
    %v283 = vunpack.c.l.b16 %v116
    %v284 = vunpack.c.h.b16 %v116
    %v285 = vunpack.c.l.b16 %v117
    %v286 = vunpack.c.h.b16 %v117
    %v287 = vunpack.c.l.b16 %v118
    %v288 = vunpack.c.h.b16 %v118
    %v289 = vunpack.c.l.b16 %v119
    %v290 = vunpack.c.h.b16 %v119
    %v291 = vunpack.c.l.b16 %v120
    %v292 = vunpack.c.h.b16 %v120
    %v293 = vunpack.c.l.b16 %v121
    %v294 = vunpack.c.h.b16 %v121
    %v295 = vunpack.c.l.b16 %v122
    %v296 = vunpack.c.h.b16 %v122
    %v297 = vunpack.c.l.b16 %v123
    %v298 = vunpack.c.h.b16 %v123
    %v299 = vunpack.c.l.b16 %v124
    %v300 = vunpack.c.h.b16 %v124
    %v301 = vunpack.c.l.b16 %v125
    %v302 = vunpack.c.h.b16 %v125
    %v303 = vunpack.c.l.b16 %v126
    %v304 = vunpack.c.h.b16 %v126
    %v305 = vunpack.c.l.b16 %v127
    %v306 = vunpack.c.h.b16 %v127
    %v307 = vunpack.c.l.b16 %v128
    %v308 = vunpack.c.h.b16 %v128
    %v309 = vunpack.c.l.b16 %v129
    %v310 = vunpack.c.h.b16 %v129
    %v311 = vunpack.c.l.b16 %v130
    %v312 = vunpack.c.h.b16 %v130
    %v313 = vunpack.c.l.b16 %v131
    %v314 = vunpack.c.h.b16 %v131
    %v315 = vunpack.c.l.b16 %v132
    %v316 = vunpack.c.h.b16 %v132
    %v317 = vunpack.c.l.b16 %v133
    %v318 = vunpack.c.h.b16 %v133
    %v319 = vunpack.c.l.b16 %v134
    %v320 = vunpack.c.h.b16 %v134
    %v321 = vunpack.c.l.b16 %v135
    %v322 = vunpack.c.h.b16 %v135
    %v323 = vunpack.c.l.b16 %v136
    %v324 = vunpack.c.h.b16 %v136
    %v325 = vunpack.c.l.b16 %v137
    %v326 = vunpack.c.h.b16 %v137
    %v327 = vunpack.c.l.b16 %v138
    %v328 = vunpack.c.h.b16 %v138
    %v329 = vunpack.c.l.b16 %v139
    %v330 = vunpack.c.h.b16 %v139
    %v331 = vunpack.c.l.b16 %v140
    %v332 = vunpack.c.h.b16 %v140
    %v333 = vunpack.c.l.b16 %v141
    %v334 = vunpack.c.h.b16 %v141
    %v335 = vunpack.c.l.b16 %v142
    %v336 = vunpack.c.h.b16 %v142
    %v337 = vunpack.c.l.b16 %v143
    %v338 = vunpack.c.h.b16 %v143
    %v339 = vunpack.c.l.b16 %v144
    %v340 = vunpack.c.h.b16 %v144
    %v341 = vunpack.c.l.b16 %v145
    %v342 = vunpack.c.h.b16 %v145
    %v343 = vunpack.c.l.b16 %v146
    %v344 = vunpack.c.h.b16 %v146
    %v345 = vunpack.c.l.b16 %v147
    %v346 = vunpack.c.h.b16 %v147
    %v347 = vunpack.c.l.b16 %v148
    %v348 = vunpack.c.h.b16 %v148
    %v349 = vunpack.c.l.b16 %v149
    %v350 = vunpack.c.h.b16 %v149
    %v351 = vunpack.c.l.b16 %v150
    %v352 = vunpack.c.h.b16 %v150
    %v353 = vpack.c.b16 %v229, %v225
    %v354 = vpack.c.b16 %v230, %v226
    %v355 = vpack.c.b16 %v231, %v227
    %v356 = vpack.c.b16 %v232, %v228
    %v357 = vpack.c.b16 %v237, %v233
    %v358 = vpack.c.b16 %v238, %v234
    %v359 = vpack.c.b16 %v239, %v235
    %v360 = vpack.c.b16 %v240, %v236
    %v361 = vpack.c.b16 %v245, %v241
    %v362 = vpack.c.b16 %v246, %v242
    %v363 = vpack.c.b16 %v247, %v243
    %v364 = vpack.c.b16 %v248, %v244
    %v365 = vpack.c.b16 %v253, %v249
    %v366 = vpack.c.b16 %v254, %v250
    %v367 = vpack.c.b16 %v255, %v251
    %v368 = vpack.c.b16 %v256, %v252
    %v369 = vpack.c.b16 %v261, %v257
    %v370 = vpack.c.b16 %v262, %v258
    %v371 = vpack.c.b16 %v263, %v259
    %v372 = vpack.c.b16 %v264, %v260
    %v373 = vpack.c.b16 %v269, %v265
    %v374 = vpack.c.b16 %v270, %v266
    %v375 = vpack.c.b16 %v271, %v267
    %v376 = vpack.c.b16 %v272, %v268
    %v377 = vpack.c.b16 %v277, %v273
    %v378 = vpack.c.b16 %v278, %v274
    %v379 = vpack.c.b16 %v279, %v275
    %v380 = vpack.c.b16 %v280, %v276
    %v381 = vpack.c.b16 %v285, %v281
    %v382 = vpack.c.b16 %v286, %v282
    %v383 = vpack.c.b16 %v287, %v283
    %v384 = vpack.c.b16 %v288, %v284
    %v385 = vpack.c.b16 %v293, %v289
    %v386 = vpack.c.b16 %v294, %v290
    %v387 = vpack.c.b16 %v295, %v291
    %v388 = vpack.c.b16 %v296, %v292
    %v389 = vpack.c.b16 %v301, %v297
    %v390 = vpack.c.b16 %v302, %v298
    %v391 = vpack.c.b16 %v303, %v299
    %v392 = vpack.c.b16 %v304, %v300
    %v393 = vpack.c.b16 %v309, %v305
    %v394 = vpack.c.b16 %v310, %v306
    %v395 = vpack.c.b16 %v311, %v307
    %v396 = vpack.c.b16 %v312, %v308
    %v397 = vpack.c.b16 %v317, %v313
    %v398 = vpack.c.b16 %v318, %v314
    %v399 = vpack.c.b16 %v319, %v315
    %v400 = vpack.c.b16 %v320, %v316
    %v401 = vpack.c.b16 %v325, %v321
    %v402 = vpack.c.b16 %v326, %v322
    %v403 = vpack.c.b16 %v327, %v323
    %v404 = vpack.c.b16 %v328, %v324
    %v405 = vpack.c.b16 %v333, %v329
    %v406 = vpack.c.b16 %v334, %v330
    %v407 = vpack.c.b16 %v335, %v331
    %v408 = vpack.c.b16 %v336, %v332
    %v409 = vpack.c.b16 %v341, %v337
    %v410 = vpack.c.b16 %v342, %v338
    %v411 = vpack.c.b16 %v343, %v339
    %v412 = vpack.c.b16 %v344, %v340
    %v413 = vpack.c.b16 %v349, %v345
    %v414 = vpack.c.b16 %v350, %v346
    %v415 = vpack.c.b16 %v351, %v347
    %v416 = vpack.c.b16 %v352, %v348
    %481 = vmatpush.bf16.msra.mxu0 %v381
    %482 = vmatpush.bf16.msra.mxu0 %v377
    %483 = vmatpush.bf16.msra.mxu0 %v373
    %484 = vmatpush.bf16.msra.mxu0 %v369
    %485 = vmatpush.bf16.msra.mxu0 %v365
    %486 = vmatpush.bf16.msra.mxu0 %v361
    %487 = vmatpush.bf16.msra.mxu0 %v357
    %488 = vmatpush.bf16.msra.mxu0 %v353
    %489 = vmatmul.bf16.gmra.mxu0 %v85
    %v490 = vpop.f32.mrf.mxu0
    %v491 = vadd.f32 %v153, %v490
    %v492 = vpop.f32.mrf.mxu0
    %493 = vdwg.mxu0
    %494 = vmatpush.bf16.msra.mxu0 %v413
    %495 = vmatpush.bf16.msra.mxu0 %v409
    %496 = vmatpush.bf16.msra.mxu0 %v405
    %497 = vmatpush.bf16.msra.mxu0 %v401
    %498 = vmatpush.bf16.msra.mxu0 %v397
    %499 = vmatpush.bf16.msra.mxu0 %v393
    %500 = vmatpush.bf16.msra.mxu0 %v389
    %501 = vmatpush.bf16.msra.mxu0 %v385
    %502 = vmatmul.bf16.gmra.mxu0 %v86
    %v503 = vpop.f32.mrf.mxu0
    %v504 = vadd.f32 %v491, %v503
    %v505 = vpop.f32.mrf.mxu0
    %506 = vdwg.mxu0
    %507 = vmatpush.bf16.msra.mxu0 %v382
    %508 = vmatpush.bf16.msra.mxu0 %v378
    %509 = vmatpush.bf16.msra.mxu0 %v374
    %510 = vmatpush.bf16.msra.mxu0 %v370
    %511 = vmatpush.bf16.msra.mxu0 %v366
    %512 = vmatpush.bf16.msra.mxu0 %v362
    %513 = vmatpush.bf16.msra.mxu0 %v358
    %514 = vmatpush.bf16.msra.mxu0 %v354
    %515 = vmatmul.bf16.gmra.mxu0 %v85
    %v516 = vpop.f32.mrf.mxu0
    %v517 = vadd.f32 %v154, %v516
    %v518 = vpop.f32.mrf.mxu0
    %519 = vdwg.mxu0
    %520 = vmatpush.bf16.msra.mxu0 %v414
    %521 = vmatpush.bf16.msra.mxu0 %v410
    %522 = vmatpush.bf16.msra.mxu0 %v406
    %523 = vmatpush.bf16.msra.mxu0 %v402
    %524 = vmatpush.bf16.msra.mxu0 %v398
    %525 = vmatpush.bf16.msra.mxu0 %v394
    %526 = vmatpush.bf16.msra.mxu0 %v390
    %527 = vmatpush.bf16.msra.mxu0 %v386
    %528 = vmatmul.bf16.gmra.mxu0 %v86
    %v529 = vpop.f32.mrf.mxu0
    %v530 = vadd.f32 %v517, %v529
    %v531 = vpop.f32.mrf.mxu0
    %532 = vdwg.mxu0
    %533 = vmatpush.bf16.msra.mxu0 %v383
    %534 = vmatpush.bf16.msra.mxu0 %v379
    %535 = vmatpush.bf16.msra.mxu0 %v375
    %536 = vmatpush.bf16.msra.mxu0 %v371
    %537 = vmatpush.bf16.msra.mxu0 %v367
    %538 = vmatpush.bf16.msra.mxu0 %v363
    %539 = vmatpush.bf16.msra.mxu0 %v359
    %540 = vmatpush.bf16.msra.mxu0 %v355
    %541 = vmatmul.bf16.gmra.mxu0 %v85
    %v542 = vpop.f32.mrf.mxu0
    %v543 = vadd.f32 %v155, %v542
    %v544 = vpop.f32.mrf.mxu0
    %545 = vdwg.mxu0
    %546 = vmatpush.bf16.msra.mxu0 %v415
    %547 = vmatpush.bf16.msra.mxu0 %v411
    %548 = vmatpush.bf16.msra.mxu0 %v407
    %549 = vmatpush.bf16.msra.mxu0 %v403
    %550 = vmatpush.bf16.msra.mxu0 %v399
    %551 = vmatpush.bf16.msra.mxu0 %v395
    %552 = vmatpush.bf16.msra.mxu0 %v391
    %553 = vmatpush.bf16.msra.mxu0 %v387
    %554 = vmatmul.bf16.gmra.mxu0 %v86
    %v555 = vpop.f32.mrf.mxu0
    %v556 = vadd.f32 %v543, %v555
    %v557 = vpop.f32.mrf.mxu0
    %558 = vdwg.mxu0
    %559 = vmatpush.bf16.msra.mxu0 %v384
    %560 = vmatpush.bf16.msra.mxu0 %v380
    %561 = vmatpush.bf16.msra.mxu0 %v376
    %562 = vmatpush.bf16.msra.mxu0 %v372
    %563 = vmatpush.bf16.msra.mxu0 %v368
    %564 = vmatpush.bf16.msra.mxu0 %v364
    %565 = vmatpush.bf16.msra.mxu0 %v360
    %566 = vmatpush.bf16.msra.mxu0 %v356
    %567 = vmatmul.bf16.gmra.mxu0 %v85
    %v568 = vpop.f32.mrf.mxu0
    %v569 = vadd.f32 %v156, %v568
    %v570 = vpop.f32.mrf.mxu0
    %571 = vdwg.mxu0
    %572 = vmatpush.bf16.msra.mxu0 %v416
    %573 = vmatpush.bf16.msra.mxu0 %v412
    %574 = vmatpush.bf16.msra.mxu0 %v408
    %575 = vmatpush.bf16.msra.mxu0 %v404
    %576 = vmatpush.bf16.msra.mxu0 %v400
    %577 = vmatpush.bf16.msra.mxu0 %v396
    %578 = vmatpush.bf16.msra.mxu0 %v392
    %579 = vmatpush.bf16.msra.mxu0 %v388
    %580 = vmatmul.bf16.gmra.mxu0 %v86
    %v581 = vpop.f32.mrf.mxu0
    %v582 = vadd.f32 %v569, %v581
    %v583 = vpop.f32.mrf.mxu0
    %584 = vdwg.mxu0
    %v585 = vld [vmem:[#allocation7] sm:$0xf]
    %v586 = vld [vmem:[#allocation7 + $0x4] sm:$0xf]
    %v587 = vld [vmem:[#allocation7 + $0x8] sm:$0xf]
    %v588 = vld [vmem:[#allocation7 + $0xc] sm:$0xf]
    %v593 = vunpack.c.l.b16 %v585
    %v594 = vunpack.c.l.b16 %v586
    %v595 = vunpack.c.l.b16 %v587
    %v596 = vunpack.c.l.b16 %v588
    %v597 = vpack.c.b16 %v594, %v593
    %v598 = vpack.c.b16 %v596, %v595
    %vm601 = vcmask 261120
    %v603 = vsel %vm601, 0, 0
    %605 = vmatpush.bf16.msra.mxu0 0
    %606 = vmatpush.bf16.msra.mxu0 0
    %607 = vmatpush.bf16.msra.mxu0 0
    %608 = vmatpush.bf16.msra.mxu0 0
    %609 = vmatpush.bf16.msra.mxu0 0
    %610 = vmatpush.bf16.msra.mxu0 0
    %611 = vmatpush.bf16.msra.mxu0 %v598
    %612 = vmatpush.bf16.msra.mxu0 %v597
    %613 = vmatmul.bf16.gmra.mxu0 %v603
    %v614 = vpop.f32.mrf.mxu0
    %v615 = vadd.f32 0.0, %v614
    %v616 = vpop.f32.mrf.mxu0
    %617 = vdwg.mxu0
    %v618 = vadd.f32 %v504, %v615
    %v619 = vmul.f32 %v618, 0.5
    %v620 = vtanh.pop %v619
    %v621 = vmul.f32 %v620, 0.5
    %v622 = vadd.f32 %v621, 0.5
    %v623 = vtanh.pop %v618
    %v624 = vmul.f32 %v622, 0.0
    %626 = vrot.lane.b32.xlu0 %v623, 32
    %v627 = vpop.permute.xlu0 %626
    %v629 = vmul.f32 %v622, %v627
    %631 = vrot.lane.b32.xlu0 %v629, 32
    %v632 = vpop.permute.xlu0 %631
    %v634 = vadd.f32 %v624, %v632
    %v635 = vtanh.pop %v634
    %637 = vrot.lane.b32.xlu0 %v635, 32
    %v638 = vpop.permute.xlu0 %637
    %v640 = vmul.f32 %v622, %v638
    %v641 = vpack.c.bf16 %v640, %v640
    %s642 = scalar_lea.vmem [#allocation7], 16
    %v643 = vld [vmem:[%s642] sm:$0xf]
    %v644 = vld [vmem:[%s642 + $0x4] sm:$0xf]
    %v645 = vld [vmem:[%s642 + $0x8] sm:$0xf]
    %v646 = vld [vmem:[%s642 + $0xc] sm:$0xf]
    %648 = vrot.lane.b32.xlu0 %v641, 64
    %v649 = vpop.permute.xlu0 %648
    %v654 = vunpack.c.l.b16 %v643
    %v655 = vunpack.c.l.b16 %v644
    %v656 = vunpack.c.l.b16 %v645
    %v657 = vunpack.c.l.b16 %v646
    %v658 = vpack.c.b16 %v655, %v654
    %v659 = vpack.c.b16 %v657, %v656
    %v663 = vsel %vm601, %v649, 0
    %665 = vmatpush.bf16.msra.mxu0 0
    %666 = vmatpush.bf16.msra.mxu0 0
    %667 = vmatpush.bf16.msra.mxu0 0
    %668 = vmatpush.bf16.msra.mxu0 0
    %669 = vmatpush.bf16.msra.mxu0 0
    %670 = vmatpush.bf16.msra.mxu0 0
    %671 = vmatpush.bf16.msra.mxu0 %v659
    %672 = vmatpush.bf16.msra.mxu0 %v658
    %673 = vmatmul.bf16.gmra.mxu0 %v663
    %v674 = vpop.f32.mrf.mxu0
    %v675 = vadd.f32 0.0, %v674
    %v676 = vpop.f32.mrf.mxu0
    %677 = vdwg.mxu0
    %v678 = vadd.f32 %v530, %v675
    %v679 = vmul.f32 %v678, 0.5
    %v680 = vtanh.pop %v679
    %v681 = vmul.f32 %v680, 0.5
    %v682 = vadd.f32 %v681, 0.5
    %v683 = vtanh.pop %v678
    %v684 = vmul.f32 %v682, %v634
    %686 = vrot.lane.b32.xlu0 %v683, 32
    %v687 = vpop.permute.xlu0 %686
    %v689 = vmul.f32 %v682, %v687
    %691 = vrot.lane.b32.xlu0 %v689, 32
    %v692 = vpop.permute.xlu0 %691
    %v694 = vadd.f32 %v684, %v692
    %v695 = vtanh.pop %v694
    %697 = vrot.lane.b32.xlu0 %v695, 32
    %v698 = vpop.permute.xlu0 %697
    %v700 = vmul.f32 %v682, %v698
    %v701 = vpack.c.bf16 %v700, %v700
    %s702 = scalar_lea.vmem [#allocation7], 32
    %v703 = vld [vmem:[%s702] sm:$0xf]
    %v704 = vld [vmem:[%s702 + $0x4] sm:$0xf]
    %v705 = vld [vmem:[%s702 + $0x8] sm:$0xf]
    %v706 = vld [vmem:[%s702 + $0xc] sm:$0xf]
    %708 = vrot.lane.b32.xlu0 %v701, 64
    %v709 = vpop.permute.xlu0 %708
    %v714 = vunpack.c.l.b16 %v703
    %v715 = vunpack.c.l.b16 %v704
    %v716 = vunpack.c.l.b16 %v705
    %v717 = vunpack.c.l.b16 %v706
    %v718 = vpack.c.b16 %v715, %v714
    %v719 = vpack.c.b16 %v717, %v716
    %v723 = vsel %vm601, %v709, 0
    %725 = vmatpush.bf16.msra.mxu0 0
    %726 = vmatpush.bf16.msra.mxu0 0
    %727 = vmatpush.bf16.msra.mxu0 0
    %728 = vmatpush.bf16.msra.mxu0 0
    %729 = vmatpush.bf16.msra.mxu0 0
    %730 = vmatpush.bf16.msra.mxu0 0
    %731 = vmatpush.bf16.msra.mxu0 %v719
    %732 = vmatpush.bf16.msra.mxu0 %v718
    %733 = vmatmul.bf16.gmra.mxu0 %v723
    %v734 = vpop.f32.mrf.mxu0
    %v735 = vadd.f32 0.0, %v734
    %v736 = vpop.f32.mrf.mxu0
    %737 = vdwg.mxu0
    %v738 = vadd.f32 %v556, %v735
    %v739 = vmul.f32 %v738, 0.5
    %v740 = vtanh.pop %v739
    %v741 = vmul.f32 %v740, 0.5
    %v742 = vadd.f32 %v741, 0.5
    %v743 = vtanh.pop %v738
    %v744 = vmul.f32 %v742, %v694
    %746 = vrot.lane.b32.xlu0 %v743, 32
    %v747 = vpop.permute.xlu0 %746
    %v749 = vmul.f32 %v742, %v747
    %751 = vrot.lane.b32.xlu0 %v749, 32
    %v752 = vpop.permute.xlu0 %751
    %v754 = vadd.f32 %v744, %v752
    %v755 = vtanh.pop %v754
    %757 = vrot.lane.b32.xlu0 %v755, 32
    %v758 = vpop.permute.xlu0 %757
    %v760 = vmul.f32 %v742, %v758
    %v761 = vpack.c.bf16 %v760, %v760
    %s762 = scalar_lea.vmem [#allocation7], 48
    %v763 = vld [vmem:[%s762] sm:$0xf]
    %v764 = vld [vmem:[%s762 + $0x4] sm:$0xf]
    %v765 = vld [vmem:[%s762 + $0x8] sm:$0xf]
    %v766 = vld [vmem:[%s762 + $0xc] sm:$0xf]
    %768 = vrot.lane.b32.xlu0 %v761, 64
    %v769 = vpop.permute.xlu0 %768
    %v774 = vunpack.c.l.b16 %v763
    %v775 = vunpack.c.l.b16 %v764
    %v776 = vunpack.c.l.b16 %v765
    %v777 = vunpack.c.l.b16 %v766
    %v778 = vpack.c.b16 %v775, %v774
    %v779 = vpack.c.b16 %v777, %v776
    %v783 = vsel %vm601, %v769, 0
    %785 = vmatpush.bf16.msra.mxu0 0
    %786 = vmatpush.bf16.msra.mxu0 0
    %787 = vmatpush.bf16.msra.mxu0 0
    %788 = vmatpush.bf16.msra.mxu0 0
    %789 = vmatpush.bf16.msra.mxu0 0
    %790 = vmatpush.bf16.msra.mxu0 0
    %791 = vmatpush.bf16.msra.mxu0 %v779
    %792 = vmatpush.bf16.msra.mxu0 %v778
    %793 = vmatmul.bf16.gmra.mxu0 %v783
    %v794 = vpop.f32.mrf.mxu0
    %v795 = vadd.f32 0.0, %v794
    %v796 = vpop.f32.mrf.mxu0
    %797 = vdwg.mxu0
    %v798 = vadd.f32 %v582, %v795
    %v799 = vmul.f32 %v798, 0.5
    %v800 = vtanh.pop %v799
    %v801 = vmul.f32 %v800, 0.5
    %v802 = vadd.f32 %v801, 0.5
    %v803 = vtanh.pop %v798
    %v804 = vmul.f32 %v802, %v754
    %806 = vrot.lane.b32.xlu0 %v803, 32
    %v807 = vpop.permute.xlu0 %806
    %v809 = vmul.f32 %v802, %v807
    %811 = vrot.lane.b32.xlu0 %v809, 32
    %v812 = vpop.permute.xlu0 %811
    %v814 = vadd.f32 %v804, %v812
    %v815 = vtanh.pop %v814
    %817 = vrot.lane.b32.xlu0 %v815, 32
    %v818 = vpop.permute.xlu0 %817
    %v820 = vmul.f32 %v802, %v818
    %822 = vrot.lane.b32.xlu0 %v820, 64
    %v823 = vpop.permute.xlu0 %822
    %vm825 = vcmask 254976
    %826 = vst.msk [vmem:[#allocation10] sm:$0x3] %vm825, %v823
    %vm827 = vcmask 517376
    %828 = vst.msk [vmem:[#allocation10] sm:$0x3] %vm827, %v814
    // Predicated region
    $region34: #{tpu_custom_call.1} parent=1 // pred_check
      _
    $region35: #{tpu_custom_call.1} parent=1 // pred_check_branch
      %830 = sbr.rel (0) target = $region37
    $region36: #{tpu_custom_call.1} parent=1 // pred_region
      %832 = vsyncadd [#allocation4], 0
      %s834 = sshll.u32 [#allocation10], 4
      %s835 = int_to_ptr.vmem [resolvable:$true] %s834
      %s836 = sshll.u32 %s4, 4
      %s837 = int_to_ptr.hbm [resolvable:$true] %s836
      %839 = dma.vmem_to_hbm [thread:$0]  %s835, 32, %s837, [#allocation4]
    $region37: #{tpu_custom_call.1} parent=1 // pred_fallthru
      _
    // Predicated region
    $region38: #{tpu_custom_call.1} parent=1 // pred_check
      _
    $region39: #{tpu_custom_call.1} parent=1 // pred_check_branch
      %841 = sbr.rel (0) target = $region41
    $region40: #{tpu_custom_call.1} parent=1 // pred_region
      %843 = dma.done [#allocation4], 32
    $region41: #{tpu_custom_call.1} parent=1 // pred_fallthru
      _
    %844 = vsyncpa [#allocation3], 1
    %845 = vsyncpa [#allocation6], 1
    %846 = vsyncpa [#allocation9], 1
    %847 = vsyncpa [#allocation4], 1

</llo_original>
